<compile_context>
chip_gen: v5e
topology: v5e:2x2
jax: 0.10.0
libtpu: 0.0.40
codegen_flags: <defaults>
</compile_context>

<pallas_src>
import functools

import jax
import jax.numpy as jnp
from jax.experimental import pallas as pl
from jax.experimental.pallas import tpu as pltpu


# Config mirroring the PyTorch `cfg` globals.
class cfg:
    num_neighbors = 4
    num_nodes = 8


# ---------------------------------------------------------------------------
# Kernels
# ---------------------------------------------------------------------------
def _unique_neighbor_kernel(x_ref, o_ref, *, half_inv_num_pairs):
    """Grid-less path: whole (K, F) array resident in one VMEM tile."""
    x = x_ref[...].astype(jnp.float32)                  # (K, F)
    s = jnp.sum(x, axis=0, keepdims=True)               # (1, F) sublane reduce
    sum_sq = jnp.sum(x * x, axis=0, keepdims=True)      # (1, F)
    cross = s * s - sum_sq                              # = 2*sum_{i<j} x_i*x_j
    o_ref[0, 0] = jnp.sum(cross) * jnp.float32(half_inv_num_pairs)


def _unique_neighbor_kernel_tiled(x_ref, o_ref, *, half_inv_num_pairs):
    """Gridded path: 1-D grid over F, (K, TILE_F) blocks, SMEM scalar acc."""
    @pl.when(pl.program_id(0) == 0)
    def _init():
        o_ref[0, 0] = jnp.float32(0.0)

    x = x_ref[...].astype(jnp.float32)                  # (K, TILE_F)
    s = jnp.sum(x, axis=0, keepdims=True)
    cross = s * s - jnp.sum(x * x, axis=0, keepdims=True)
    # Output block index is constant across the grid -> resident accumulator.
    o_ref[0, 0] += jnp.sum(cross) * jnp.float32(half_inv_num_pairs)


# ---------------------------------------------------------------------------
# Wrapper
# ---------------------------------------------------------------------------
_GRIDLESS_MAX_BYTES = 4 << 20      # below this, a single resident tile is best
_BLOCK_PAIR_BUDGET_BYTES = 8 << 20  # 2x double-buffered input block budget


def _pick_tile_f(K, F, itemsize):
    """Return None for the grid-less path, else a lane-dense TILE_F | F."""
    if K * F * itemsize <= _GRIDLESS_MAX_BYTES or F % 128 != 0:
        return None
    max_lanes = max(128, _BLOCK_PAIR_BUDGET_BYTES // (2 * K * itemsize))
    best = 128
    t = 128
    while t <= min(F, max_lanes):
        if F % t == 0:
            best = t
        t += 128
    return best


@functools.partial(jax.jit, static_argnames=("tile_f",))
def _unique_neighbor_loss_impl(affinity_matrix, tile_f=None):
    K, N1, N2 = affinity_matrix.shape
    F = N1 * N2

    if K < 2:
        # num_pairs == 0: no pair terms; guard the divide-by-zero.
        return jnp.zeros((), dtype=jnp.float32)

    x = affinity_matrix.reshape(K, F)          # contiguous -> free reshape
    num_pairs = K * (K - 1) // 2
    half_inv_num_pairs = 0.5 / float(num_pairs)

    if tile_f is None:
        tile_f = _pick_tile_f(K, F, x.dtype.itemsize)

    if tile_f is None or tile_f >= F:
        # Grid-less: one DMA, one scalar SMEM writeback.
        kernel = functools.partial(
            _unique_neighbor_kernel, half_inv_num_pairs=half_inv_num_pairs)
        out = pl.pallas_call(
            kernel,
            out_shape=jax.ShapeDtypeStruct((1, 1), jnp.float32),
            in_specs=[pl.BlockSpec(memory_space=pltpu.MemorySpace.VMEM)],
            out_specs=pl.BlockSpec(memory_space=pltpu.MemorySpace.SMEM),
        )(x)
    else:
        assert F % tile_f == 0 and tile_f % 128 == 0
        kernel = functools.partial(
            _unique_neighbor_kernel_tiled,
            half_inv_num_pairs=half_inv_num_pairs)
        out = pl.pallas_call(
            kernel,
            out_shape=jax.ShapeDtypeStruct((1, 1), jnp.float32),
            grid=(F // tile_f,),
            in_specs=[pl.BlockSpec((K, tile_f), lambda f: (0, f))],
            out_specs=pl.BlockSpec(
                (1, 1), lambda f: (0, 0),
                memory_space=pltpu.MemorySpace.SMEM),
            compiler_params=pltpu.CompilerParams(
                dimension_semantics=("arbitrary",),
                vmem_limit_bytes=32 * 1024 * 1024),
        )(x)
    return out[0, 0]


def unique_neighbor_loss(affinity_matrix):
    K, N1, N2 = affinity_matrix.shape
    assert K == cfg.num_neighbors
    assert N1 == cfg.num_nodes and N2 == cfg.num_nodes
    return _unique_neighbor_loss_impl(affinity_matrix)


# ---------------------------------------------------------------------------
# Self-test
# ---------------------------------------------------------------------------
def _reference(aff):
    """Plain-JAX reference matching the PyTorch double loop exactly."""
    K = aff.shape[0]
    loss = 0.0
    for i in range(K):
        for j in range(i + 1, K):
            loss = loss + jnp.sum(aff[i] * aff[j])
    return loss / float(K * (K - 1) / 2)


if __name__ == "__main__":
    key = jax.random.PRNGKey(0)
    K, N = cfg.num_neighbors, cfg.num_nodes

    # Deterministic example input: row-softmaxed affinities, shape (K, N, N).
    affinity = jax.nn.softmax(
        jax.random.normal(key, (K, N, N), dtype=jnp.float32), axis=-1)

    loss = jax.block_until_ready(unique_neighbor_loss(affinity))
    ref = _reference(affinity)
    assert jnp.allclose(loss, ref, rtol=1e-5, atol=1e-6), (loss, ref)

    # Also exercise the gridded (tiled-F) path at a small shape by forcing a
    # tile: (4, 32, 32) -> F = 1024, TILE_F = 256 -> grid of 4 steps.
    affinity2 = jax.nn.softmax(
        jax.random.normal(jax.random.PRNGKey(0), (K, 32, 32),
                          dtype=jnp.float32), axis=-1)
    loss2 = jax.block_until_ready(
        _unique_neighbor_loss_impl(affinity2, tile_f=256))
    ref2 = _reference(affinity2)
    assert jnp.allclose(loss2, ref2, rtol=1e-5, atol=1e-6), (loss2, ref2)

    print("KERNEL_OK")
</pallas_src>

<mosaic_0001>
module attributes {stable_mosaic.version = 11 : i64} {
  func.func @_unique_neighbor_kernel(%arg0: memref<4x64xf32, #tpu.memory_space<vmem>>, %arg1: memref<1x1xf32, #tpu.memory_space<smem>>) attributes {dimension_semantics = [], scalar_prefetch = 0 : i64, scratch_operands = 0 : i64, tpu.core_type = #tpu.core_type<tc>} {
    %c0 = arith.constant 0 : index
    %c0_0 = arith.constant 0 : index
    %0 = vector.load %arg0[%c0, %c0_0] : memref<4x64xf32, #tpu.memory_space<vmem>>, vector<4x64xf32>
    %cst = arith.constant dense<0.000000e+00> : vector<64xf32>
    %1 = vector.multi_reduction <add>, %0, %cst [0] : vector<4x64xf32> to vector<64xf32>
    %2 = vector.shape_cast %1 : vector<64xf32> to vector<1x64xf32>
    %3 = arith.mulf %0, %0 : vector<4x64xf32>
    %cst_1 = arith.constant dense<0.000000e+00> : vector<64xf32>
    %4 = vector.multi_reduction <add>, %3, %cst_1 [0] : vector<4x64xf32> to vector<64xf32>
    %5 = vector.shape_cast %4 : vector<64xf32> to vector<1x64xf32>
    %6 = arith.mulf %2, %2 : vector<1x64xf32>
    %7 = arith.subf %6, %5 : vector<1x64xf32>
    %8 = vector.shape_cast %7 : vector<1x64xf32> to vector<1x1x64xf32>
    %cst_2 = arith.constant dense<0.000000e+00> : vector<1xf32>
    %9 = vector.multi_reduction <add>, %8, %cst_2 [1, 2] : vector<1x1x64xf32> to vector<1xf32>
    %10 = vector.shape_cast %9 : vector<1xf32> to vector<1x1x1xf32>
    %11 = vector.extract %10[0, 0, 0] : f32 from vector<1x1x1xf32>
    %cst_3 = arith.constant 0.0833333358 : f32
    %12 = arith.mulf %11, %cst_3 : f32
    %c0_4 = arith.constant 0 : index
    %c0_5 = arith.constant 0 : index
    %13 = memref.load %arg1[%c0_4, %c0_5] : memref<1x1xf32, #tpu.memory_space<smem>>
    memref.store %12, %arg1[%c0_4, %c0_5] : memref<1x1xf32, #tpu.memory_space<smem>>
    return
  }
}

</mosaic_0001>

<llo_original>
// kernel: _unique_neighbor_loss_impl.1
$region0: #{_unique_neighbor_loss_impl.1}
  #allocation0 [shape = 'u32[]', space=smem, size = 0x4, offset = 0x4, fixed_abs, tag = 'smem constant byte address 0x4 - core index']
  #allocation1 [shape = 'u32[72,128]{1,0:T(1,128)}', space=vmem, size = 0x9000, scoped, tag = 'internal scratch']
  %s0 = inlined_call_operand.vmem [shape: f32[4,64], index: 0, kind: input, shape index: {}]
  %s1 = inlined_call_operand.hbm [shape: f32[1,1], index: 1, kind: output, shape index: {}]
  %s2 = sld [smem:[#allocation0]]
  $region14: #{_unique_neighbor_loss_impl.1} parent=0
    _
  %s4 = ssub.s32 1, %s2
  %s5 = scalar_select 0, %s4, %s2
  $region1: #{_unique_neighbor_loss_impl.1} parent=0
    #allocation2 [shape = 'u8[512]{0}', space=smem, size = 0x200, scoped, tag = 'output window, operand 0, single buffered']
    #allocation3 [shape = 's32[1]{0}', space=sflag, size = 0x4, scoped, tag = 'scoped memory for _unique_neighbor_loss_impl.1']
    %6 = vsyncpa [#allocation3], 0
    // Predicated region
    $region2: #{_unique_neighbor_loss_impl.1} parent=1 // pred_check
      _
    $region3: #{_unique_neighbor_loss_impl.1} parent=1 // pred_check_branch
      %8 = sbr.rel (0) target = $region5
    $region4: #{_unique_neighbor_loss_impl.1} parent=1 // pred_region
      _
    $region5: #{_unique_neighbor_loss_impl.1} parent=1 // pred_fallthru
      _
    %v9 = vld [vmem:[%s0] sm:$0xf]
    %vm10 = vcmask 519168
    %v11 = vsel %vm10, %v9, 0.0
    %v12 = vrot.slane %v11, 4
    %v13 = vadd.f32 %v11, %v12
    %v14 = vrot.slane %v13, 2
    %v15 = vadd.f32 %v13, %v14
    %v16 = vrot.slane %v15, 1
    %v17 = vadd.f32 %v15, %v16
    %v18 = vmul.f32 %v9, %v9
    %v19 = vsel %vm10, %v18, 0.0
    %v20 = vrot.slane %v19, 4
    %v21 = vadd.f32 %v19, %v20
    %v22 = vrot.slane %v21, 2
    %v23 = vadd.f32 %v21, %v22
    %v24 = vrot.slane %v23, 1
    %v25 = vadd.f32 %v23, %v24
    %v26 = vmul.f32 %v17, %v17
    %v27 = vsub.f32 %v26, %v25
    %vm28 = vcmask 516096
    %v29 = vsel %vm28, %v27, 0.0
    %30 = vadd.xlane.f32.xlu0 %v29
    %v31 = vpop.xlane.xlu0 %30
    %v32 = vrot.slane %v31, 4
    %v33 = vadd.f32 %v31, %v32
    %v34 = vrot.slane %v33, 2
    %v35 = vadd.f32 %v33, %v34
    %v36 = vrot.slane %v35, 1
    %v37 = vadd.f32 %v35, %v36
    %s38 = vtos %v37
    %s39 = smul.f32 %s38, 0.083333336
    %s40 = scalar_lea.smem [#allocation2], 0
    %41 = sst [smem:[%s40]] %s39
    // Predicated region
    $region6: #{_unique_neighbor_loss_impl.1} parent=1 // pred_check
      _
    $region7: #{_unique_neighbor_loss_impl.1} parent=1 // pred_check_branch
      %43 = sbr.rel (0) target = $region9
    $region8: #{_unique_neighbor_loss_impl.1} parent=1 // pred_region
      %45 = vsyncadd [#allocation3], 0
      %s47 = sshll.u32 %s1, 4
      %s48 = int_to_ptr.hbm [resolvable:$true] %s47
      %50 = dma.smem_to_hbm [#allocation2], 16, %s48, [#allocation3]
    $region9: #{_unique_neighbor_loss_impl.1} parent=1 // pred_fallthru
      _
    // Predicated region
    $region10: #{_unique_neighbor_loss_impl.1} parent=1 // pred_check
      _
    $region11: #{_unique_neighbor_loss_impl.1} parent=1 // pred_check_branch
      %52 = sbr.rel (0) target = $region13
    $region12: #{_unique_neighbor_loss_impl.1} parent=1 // pred_region
      %54 = dma.done [#allocation3], 16
    $region13: #{_unique_neighbor_loss_impl.1} parent=1 // pred_fallthru
      _
    %55 = sfence
    %56 = vsyncpa [#allocation3], 1

</llo_original>
